<compile_context>
chip_gen: v6e
topology: v6e:2x2x1
jax: 0.10.0
libtpu: 0.0.40
codegen_flags: <defaults>
</compile_context>

<pallas_src>
import operator

import jax
import jax.numpy as jnp
from jax.experimental import pallas as pl
from jax.experimental.pallas import tpu as pltpu


def _make_broadcast_binop_kernel(op):
    """Returns a Pallas kernel body that applies `op` with implicit broadcasting."""

    def kernel(x_ref, y_ref, o_ref):
        # x_ref: (1, N), y_ref: (M, 1), o_ref: (M, N).
        # jnp broadcasting fuses the (1,N) x (M,1) -> (M,N) expansion into the op.
        o_ref[...] = op(x_ref[...], y_ref[...]).astype(o_ref.dtype)

    return kernel


def broadcast_binop(x: jax.Array, y: jax.Array, op=operator.add) -> jax.Array:
    """op(x, y) with numpy-style broadcasting, computed inside a Pallas kernel.

    x: (1, N), y: (M, 1) -> (M, N)
    """
    assert x.ndim == 2 and y.ndim == 2
    assert x.shape[0] == 1 and y.shape[1] == 1
    M = y.shape[0]
    N = x.shape[1]
    out_dtype = jnp.result_type(x.dtype, y.dtype)

    kernel = _make_broadcast_binop_kernel(op)

    # No grid: each operand is one full-resident VMEM block. This avoids the
    # scf.for grid loop and per-step overhead of the previous grid=(1,) form.
    return pl.pallas_call(
        kernel,
        out_shape=jax.ShapeDtypeStruct((M, N), out_dtype),
        in_specs=[
            pl.BlockSpec(memory_space=pltpu.MemorySpace.VMEM),
            pl.BlockSpec(memory_space=pltpu.MemorySpace.VMEM),
        ],
        out_specs=pl.BlockSpec(memory_space=pltpu.MemorySpace.VMEM),
    )(x, y)


if __name__ == "__main__":
    key = jax.random.PRNGKey(0)
    kx, ky = jax.random.split(key)
    # Matches the module's test_data shapes: torch.rand(1, 10), torch.rand(10, 1)
    x = jax.random.uniform(kx, (1, 10), dtype=jnp.float32)
    y = jax.random.uniform(ky, (10, 1), dtype=jnp.float32)

    out = broadcast_binop(x, y, op=operator.add)
    out = jax.block_until_ready(out)

    # Reference check against plain JAX broadcasting semantics.
    ref = x + y
    assert out.shape == (10, 10), out.shape
    assert jnp.allclose(out, ref, atol=1e-6), "mismatch vs reference"

    print("KERNEL_OK")
</pallas_src>

<mosaic_0001>
module attributes {stable_mosaic.version = 11 : i64} {
  func.func @kernel(%arg0: memref<1x10xf32, #tpu.memory_space<vmem>>, %arg1: memref<10x1xf32, #tpu.memory_space<vmem>>, %arg2: memref<10x10xf32, #tpu.memory_space<vmem>>) attributes {dimension_semantics = [], scalar_prefetch = 0 : i64, scratch_operands = 0 : i64, tpu.core_type = #tpu.core_type<tc>} {
    %c0 = arith.constant 0 : index
    %c0_0 = arith.constant 0 : index
    %0 = vector.load %arg0[%c0, %c0_0] : memref<1x10xf32, #tpu.memory_space<vmem>>, vector<1x10xf32>
    %c0_1 = arith.constant 0 : index
    %c0_2 = arith.constant 0 : index
    %1 = vector.load %arg1[%c0_1, %c0_2] : memref<10x1xf32, #tpu.memory_space<vmem>>, vector<10x1xf32>
    %2 = vector.broadcast %0 : vector<1x10xf32> to vector<10x10xf32>
    %3 = vector.broadcast %1 : vector<10x1xf32> to vector<10x10xf32>
    %4 = arith.addf %2, %3 : vector<10x10xf32>
    %c0_3 = arith.constant 0 : index
    %c0_4 = arith.constant 0 : index
    %5 = vector.load %arg2[%c0_3, %c0_4] : memref<10x10xf32, #tpu.memory_space<vmem>>, vector<10x10xf32>
    tpu.vector_store %arg2[%c0_3, %c0_4], %4 {strides = array<i32>} : memref<10x10xf32, #tpu.memory_space<vmem>>, vector<10x10xf32>,
    return
  }
}

</mosaic_0001>

<llo_original>
// kernel: tpu_custom_call.1
$region0: #{tpu_custom_call.1}
  #allocation0 [shape = 'u32[]', space=smem, size = 0x4, offset = 0x4, fixed_abs, tag = 'smem constant byte address 0x4 - core index']
  #allocation1 [shape = 'u32[144,128]{1,0:T(1,128)}', space=vmem, size = 0x12000, scoped, tag = 'internal scratch']
  %s0 = inlined_call_operand.vmem [shape: f32[1,10], index: 0, kind: input, shape index: {}]
  %s1 = inlined_call_operand.vmem [shape: f32[10,1], index: 1, kind: input, shape index: {}]
  %s2 = inlined_call_operand.hbm [shape: f32[10,10], index: 2, kind: output, shape index: {}]
  %s3 = sld [smem:[#allocation0]]
  $region18: #{tpu_custom_call.1} parent=0
    _
  %s5 = ssub.s32 1, %s3
  %s6 = scalar_select 0, %s5, %s3
  $region1: #{tpu_custom_call.1} parent=0
    #allocation2 [shape = 'u8[8192]{0}', space=vmem, size = 0x2000, scoped, tag = 'output window, operand 0, single buffered']
    #allocation3 [shape = 's32[1]{0}', space=sflag, size = 0x4, scoped, tag = 'scoped memory for tpu_custom_call.1']
    %7 = vsyncpa [#allocation3], 0
    // Predicated region
    $region2: #{tpu_custom_call.1} parent=1 // pred_check
      _
    $region3: #{tpu_custom_call.1} parent=1 // pred_check_branch
      %9 = sbr.rel (0) target = $region5
    $region4: #{tpu_custom_call.1} parent=1 // pred_region
      _
    $region5: #{tpu_custom_call.1} parent=1 // pred_fallthru
      _
    // Predicated region
    $region6: #{tpu_custom_call.1} parent=1 // pred_check
      _
    $region7: #{tpu_custom_call.1} parent=1 // pred_check_branch
      %11 = sbr.rel (0) target = $region9
    $region8: #{tpu_custom_call.1} parent=1 // pred_region
      _
    $region9: #{tpu_custom_call.1} parent=1 // pred_fallthru
      _
    %v12 = vld [vmem:[%s0] sm:$0x1]
    %v13 = vld [vmem:[%s1] sm:$0xff]
    %v14 = vld [vmem:[%s1 + $0x8] sm:$0x3]
    %v16 = vlaneseq
    %v17 = vshrl.u32 %v16, 7
    %v18 = vsub.s32 0, %v17
    %v19 = vrot.slane %v12, %v18
    %22 = vset.pattern.permute.xlu0 0
    %23 = vperm.xlu0 %22, %v13
    %v24 = vpop.permute.xlu0 %23
    %27 = vset.pattern.permute.xlu0 0
    %28 = vperm.xlu0 %27, %v14
    %v29 = vpop.permute.xlu0 %28
    %v31 = vadd.f32 %v19, %v24
    %v32 = vadd.f32 %v19, %v29
    %vm33 = vcmask 80896
    %34 = vst.msk [vmem:[#allocation2] sm:$0xff] %vm33, %v31
    %vm35 = vcmask 74752
    %36 = vst.msk [vmem:[#allocation2 + $0x8] sm:$0x3] %vm35, %v32
    // Predicated region
    $region10: #{tpu_custom_call.1} parent=1 // pred_check
      _
    $region11: #{tpu_custom_call.1} parent=1 // pred_check_branch
      %38 = sbr.rel (0) target = $region13
    $region12: #{tpu_custom_call.1} parent=1 // pred_region
      %s40 = ssub.s32 256, 256
      %41 = vsyncadd [#allocation3], %s40
      %s42 = sshll.u32 [#allocation2], 4
      %s43 = int_to_ptr.vmem [resolvable:$true] %s42
      %48 = dma.vmem_to_hbm [thread:$0]  %s43, 256, %s2, [#allocation3], 128, 128, 8
    $region13: #{tpu_custom_call.1} parent=1 // pred_fallthru
      _
    // Predicated region
    $region14: #{tpu_custom_call.1} parent=1 // pred_check
      _
    $region15: #{tpu_custom_call.1} parent=1 // pred_check_branch
      %50 = sbr.rel (0) target = $region17
    $region16: #{tpu_custom_call.1} parent=1 // pred_region
      %51 = dma.done [#allocation3], 256
    $region17: #{tpu_custom_call.1} parent=1 // pred_fallthru
      _
    %52 = vsyncpa [#allocation3], 1

</llo_original>
